<compile_context>
chip_gen: v7x
topology: tpu7x:2x2x1
jax: 0.10.0
libtpu: 0.0.40
codegen_flags: <defaults>
</compile_context>

<pallas_src>
import jax
import jax.numpy as jnp
from jax.experimental import pallas as pl
from jax.experimental.pallas import tpu as pltpu

NUM_NODE_FEATURES = 33
HEAD1, HEAD2, HEAD3 = 50, 20, 1          # lin1/lin2/lin3 output widths


def _round_up(v, m):
    return ((v + m - 1) // m) * m


IN_F_PAD = _round_up(NUM_NODE_FEATURES, 8)   # 40


# ---------------------------------------------------------------------------
# Slab layouts. Row offsets are multiples of 8 so every in-kernel slice is
# sublane aligned.
# ---------------------------------------------------------------------------
def _gin_layout(dim_h):
    b1_off = IN_F_PAD                # folded bias row
    w2_off = b1_off + 8              # second linear weight
    b2_off = w2_off + dim_h          # second bias row
    layer_rows = b2_off + 8
    return b1_off, w2_off, b2_off, layer_rows


def _head_layout(dim_h):
    d3 = 3 * dim_h
    r_bl1 = _round_up(d3, 8)
    r_wl2 = r_bl1 + 8
    r_bl2 = r_wl2 + _round_up(HEAD1, 8)
    r_wl3 = r_bl2 + 8
    r_bl3 = r_wl3 + _round_up(HEAD1, 8)
    rows = r_bl3 + 8
    return d3, r_bl1, r_wl2, r_bl2, r_wl3, r_bl3, rows


def _unpack_gin(g, layer, dim_h):
    """Static slices; works on both a VMEM ref (kernel) and a jnp array (ref)."""
    b1_off, w2_off, b2_off, layer_rows = _gin_layout(dim_h)
    base = layer * layer_rows
    d_in = IN_F_PAD if layer == 0 else dim_h
    w1 = g[base:base + d_in, :]
    b1 = g[base + b1_off:base + b1_off + 1, :]
    w2 = g[base + w2_off:base + w2_off + dim_h, :]
    b2 = g[base + b2_off:base + b2_off + 1, :]
    return w1, b1, w2, b2


def _unpack_head(h, dim_h):
    d3, r_bl1, r_wl2, r_bl2, r_wl3, r_bl3, _ = _head_layout(dim_h)
    wl1 = h[0:d3, :]
    bl1 = h[r_bl1:r_bl1 + 1, :]
    wl2 = h[r_wl2:r_wl2 + HEAD1, :]
    bl2 = h[r_bl2:r_bl2 + 1, :]
    wl3 = h[r_wl3:r_wl3 + HEAD1, :]
    bl3 = h[r_bl3:r_bl3 + 1, :]
    return wl1, bl1, wl2, bl2, wl3, bl3


# ---------------------------------------------------------------------------
# Forward math shared by the Pallas kernel and the packed reference.
# All matmuls are bf16 x bf16 -> f32 (MXU-native) with f32 accumulation.
# ---------------------------------------------------------------------------
def _network_math(x_bf, ahat_bf, pool_bf, gin_parts, head_parts, dim_h):
    f32, bf16 = jnp.float32, jnp.bfloat16

    def gin_layer(h_bf, parts):
        w1, b1, w2, b2 = parts
        # GIN (eps=0): (1+eps)*x_i + sum_j x_j  ==  (A + I) @ h
        agg = jnp.dot(ahat_bf, h_bf, preferred_element_type=f32)
        z = jnp.dot(agg.astype(bf16), w1.astype(bf16),
                    preferred_element_type=f32) + b1   # Linear + folded BN
        z = jnp.maximum(z, 0.0)                        # ReLU
        z = jnp.dot(z.astype(bf16), w2.astype(bf16),
                    preferred_element_type=f32) + b2   # Linear
        return jnp.maximum(z, 0.0)                     # ReLU

    h1 = gin_layer(x_bf, gin_parts[0])
    h2 = gin_layer(h1.astype(bf16), gin_parts[1])
    h3 = gin_layer(h2.astype(bf16), gin_parts[2])

    wl1, bl1, wl2, bl2, wl3, bl3 = head_parts
    # lin1(concat(pool(h1), pool(h2), pool(h3)))
    #   == pool @ (h1 @ W1a + h2 @ W1b + h3 @ W1c) + b1    (linearity)
    # -> avoids lane-concat and three separate pool matmuls; += accumulate
    #    chain is MRB-friendly on v7x.
    m = jnp.dot(h1.astype(bf16), wl1[0:dim_h].astype(bf16),
                preferred_element_type=f32)
    m += jnp.dot(h2.astype(bf16), wl1[dim_h:2 * dim_h].astype(bf16),
                 preferred_element_type=f32)
    m += jnp.dot(h3.astype(bf16), wl1[2 * dim_h:3 * dim_h].astype(bf16),
                 preferred_element_type=f32)
    z = jnp.dot(pool_bf, m.astype(bf16), preferred_element_type=f32) + bl1
    z = jnp.maximum(z, 0.0)
    # Dropout(p=0.1) is identity in eval mode.
    z = jnp.dot(z.astype(bf16), wl2.astype(bf16),
                preferred_element_type=f32) + bl2
    z = jnp.maximum(z, 0.0)
    z = jnp.dot(z.astype(bf16), wl3.astype(bf16),
                preferred_element_type=f32) + bl3
    return z[:, 0:1]      # lin2/lin3 are zero-padded to 50 lanes; col 0 is real


# ---------------------------------------------------------------------------
# Pallas kernel factory (fixed n / num_graphs / dim_h baked in as statics).
# ---------------------------------------------------------------------------
def make_forward(n, num_graphs, dim_h):
    n_pad = _round_up(n, 16)

    def kernel(x_ref, ap_ref, gin_ref, head_ref, out_ref):
        ahat = ap_ref[0:n, :]                        # [N, N]  bf16  (A + I)
        pool = ap_ref[n_pad:n_pad + num_graphs, :]   # [G, N]  bf16  one-hot
        gin_parts = [_unpack_gin(gin_ref, l, dim_h) for l in range(3)]
        head_parts = _unpack_head(head_ref, dim_h)
        logit = _network_math(x_ref[...], ahat, pool, gin_parts, head_parts,
                              dim_h)
        # sigmoid: exp and approximate reciprocal both issue on the EUP slot.
        out_ref[...] = pl.reciprocal(1.0 + jnp.exp(-logit), approx=True)

    vmem = pl.BlockSpec(memory_space=pltpu.MemorySpace.VMEM)
    call = pl.pallas_call(
        kernel,
        out_shape=jax.ShapeDtypeStruct((num_graphs, 1), jnp.float32),
        in_specs=[vmem] * 4,
        out_specs=vmem,
    )
    # TODO(synk): for large N / many graphs, add a grid over node-row blocks
    # (dimension_semantics=("parallel",)) so v7x's second TensorCore is used
    # and the dense [N, N] adjacency is tiled instead of held whole in VMEM.
    return jax.jit(call)


# ---------------------------------------------------------------------------
# One-time host-side packing (hoisted out of the per-call path).
# ---------------------------------------------------------------------------
def pack_gin_slab(params, dim_h):
    """Per layer: [w1 (BN folded); b1; w2; b2] stacked into one f32 slab."""
    b1_off, w2_off, b2_off, layer_rows = _gin_layout(dim_h)
    slab = jnp.zeros((3 * layer_rows, dim_h), jnp.float32)
    for i in range(3):
        c = params[f"conv{i+1}"]
        scale = c["gamma"] / jnp.sqrt(c["running_var"] + 1e-5)
        shift = c["beta"] - c["running_mean"] * scale
        w1 = (c["w1"] * scale[:, None]).T            # [in_f, dim_h], BN folded
        b1 = c["b1"] * scale + shift                 # [dim_h]
        base = i * layer_rows
        slab = slab.at[base:base + w1.shape[0], :].set(w1)
        slab = slab.at[base + b1_off, :].set(b1)
        slab = slab.at[base + w2_off:base + w2_off + dim_h, :].set(c["w2"].T)
        slab = slab.at[base + b2_off, :].set(c["b2"])
    return slab


def pack_head_slab(params, dim_h):
    """lin1 / lin2 / lin3 (transposed, zero-padded to 50 lanes) in one slab."""
    d3, r_bl1, r_wl2, r_bl2, r_wl3, r_bl3, rows = _head_layout(dim_h)
    slab = jnp.zeros((rows, HEAD1), jnp.float32)
    slab = slab.at[0:d3, :].set(params["lin1"]["w"].T)
    slab = slab.at[r_bl1, :].set(params["lin1"]["b"])
    slab = slab.at[r_wl2:r_wl2 + HEAD1, 0:HEAD2].set(params["lin2"]["w"].T)
    slab = slab.at[r_bl2, 0:HEAD2].set(params["lin2"]["b"])
    slab = slab.at[r_wl3:r_wl3 + HEAD2, 0:HEAD3].set(params["lin3"]["w"].T)
    slab = slab.at[r_bl3, 0:HEAD3].set(params["lin3"]["b"])
    return slab


def build_graph_slab(edge_index, batch, n, num_graphs):
    """Dense A+I and the one-hot pooling matrix packed into one bf16 slab."""
    n_pad = _round_up(n, 16)
    g_pad = _round_up(num_graphs, 16)
    src, dst = edge_index[0], edge_index[1]
    a = jnp.zeros((n, n), jnp.float32).at[dst, src].add(1.0)
    ahat = a + jnp.eye(n, dtype=jnp.float32)
    pool = (batch[None, :] == jnp.arange(num_graphs)[:, None]).astype(jnp.float32)
    slab = jnp.zeros((n_pad + g_pad, n), jnp.float32)
    slab = slab.at[0:n, :].set(ahat)
    slab = slab.at[n_pad:n_pad + num_graphs, :].set(pool)
    return slab.astype(jnp.bfloat16)   # entries are small ints -> exact in bf16


def pad_features(x):
    n = x.shape[0]
    xp = jnp.zeros((n, IN_F_PAD), jnp.float32).at[:, :NUM_NODE_FEATURES].set(x)
    return xp.astype(jnp.bfloat16)


# ---------------------------------------------------------------------------
# Parameter construction (deterministic, PyTorch-shaped).
# ---------------------------------------------------------------------------
def init_params(key, dim_h):
    keys = jax.random.split(key, 16)

    def lin(k, out_f, in_f):
        kw, kb = jax.random.split(k)
        w = jax.random.normal(kw, (out_f, in_f), jnp.float32) * 0.1
        b = jax.random.normal(kb, (out_f,), jnp.float32) * 0.1
        return w, b

    params = {}
    in_f = NUM_NODE_FEATURES
    for i in range(3):
        w1, b1 = lin(keys[2 * i], dim_h, in_f)
        w2, b2 = lin(keys[2 * i + 1], dim_h, dim_h)
        params[f"conv{i+1}"] = dict(
            w1=w1, b1=b1, w2=w2, b2=b2,
            gamma=jnp.ones((dim_h,), jnp.float32),
            beta=jnp.zeros((dim_h,), jnp.float32),
            running_mean=jnp.zeros((dim_h,), jnp.float32),
            running_var=jnp.ones((dim_h,), jnp.float32),
        )
        in_f = dim_h

    params["lin1"] = dict(zip(("w", "b"), lin(keys[6], HEAD1, dim_h * 3)))
    params["lin2"] = dict(zip(("w", "b"), lin(keys[7], HEAD2, HEAD1)))
    params["lin3"] = dict(zip(("w", "b"), lin(keys[8], HEAD3, HEAD2)))
    return params


# ---------------------------------------------------------------------------
# References.
# ---------------------------------------------------------------------------
def reference_from_packed(x_bf, ap_slab, gin_slab, head_slab, n, num_graphs,
                          dim_h):
    """Plain-JAX replica of the kernel math (same slabs / bf16 rounding)."""
    n_pad = _round_up(n, 16)
    ahat = ap_slab[0:n, :]
    pool = ap_slab[n_pad:n_pad + num_graphs, :]
    gin_parts = [_unpack_gin(gin_slab, l, dim_h) for l in range(3)]
    head_parts = _unpack_head(head_slab, dim_h)
    logit = _network_math(x_bf, ahat, pool, gin_parts, head_parts, dim_h)
    return jax.nn.sigmoid(logit)


def reference_forward_f32(x, edge_index, batch, params, num_graphs):
    """Original (un-quantized, un-fused) eval-mode forward in f32."""
    n = x.shape[0]
    src, dst = edge_index[0], edge_index[1]
    a = jnp.zeros((n, n), jnp.float32).at[dst, src].add(1.0)
    ahat = a + jnp.eye(n, dtype=jnp.float32)
    pool = (batch[None, :] == jnp.arange(num_graphs)[:, None]).astype(jnp.float32)

    def gin(h, c):
        agg = ahat @ h
        z = agg @ c["w1"].T + c["b1"]
        z = ((z - c["running_mean"]) / jnp.sqrt(c["running_var"] + 1e-5)
             * c["gamma"] + c["beta"])
        z = jax.nn.relu(z)
        z = z @ c["w2"].T + c["b2"]
        return jax.nn.relu(z)

    h1 = gin(x, params["conv1"])
    h2 = gin(h1, params["conv2"])
    h3 = gin(h2, params["conv3"])
    h = jnp.concatenate([pool @ h1, pool @ h2, pool @ h3], axis=1)
    h = jax.nn.relu(h @ params["lin1"]["w"].T + params["lin1"]["b"])
    h = jax.nn.relu(h @ params["lin2"]["w"].T + params["lin2"]["b"])
    h = h @ params["lin3"]["w"].T + params["lin3"]["b"]
    return jax.nn.sigmoid(h)


if __name__ == "__main__":
    dim_h = 32
    nodes_per_graph = 8
    num_graphs = 2
    n = nodes_per_graph * num_graphs

    key = jax.random.PRNGKey(0)
    kx, kp = jax.random.split(key)

    # Node features [N, num_node_features]
    x = jax.random.normal(kx, (n, NUM_NODE_FEATURES), jnp.float32)

    # Bidirectional ring within each graph -> edge_index [2, 32]
    src_list, dst_list = [], []
    for g in range(num_graphs):
        off = g * nodes_per_graph
        for i in range(nodes_per_graph):
            u = off + i
            v = off + (i + 1) % nodes_per_graph
            src_list += [u, v]
            dst_list += [v, u]
    edge_index = jnp.array([src_list, dst_list], dtype=jnp.int32)

    # Graph assignment per node
    batch = jnp.repeat(jnp.arange(num_graphs, dtype=jnp.int32), nodes_per_graph)

    params = init_params(kp, dim_h)

    # ---- one-time packing (hoisted out of the per-call path) ----
    gin_slab = pack_gin_slab(params, dim_h)          # [264, 32] f32
    head_slab = pack_head_slab(params, dim_h)        # [232, 50] f32
    ap_slab = build_graph_slab(edge_index, batch, n, num_graphs)  # [32,16] bf16
    x_pad = pad_features(x)                          # [16, 40] bf16

    forward = make_forward(n, num_graphs, dim_h)
    out = jax.block_until_ready(forward(x_pad, ap_slab, gin_slab, head_slab))
    assert out.shape == (num_graphs, 1)

    # Tight check against a plain-JAX replica of the exact kernel math.
    ref_tight = reference_from_packed(x_pad, ap_slab, gin_slab, head_slab,
                                      n, num_graphs, dim_h)
    assert jnp.allclose(out, ref_tight, rtol=5e-3, atol=5e-3), (out, ref_tight)

    # Sanity check against the original full-f32 eval-mode forward
    # (loose tolerance: the kernel runs the MXU in bf16 with f32 accumulation).
    ref_f32 = reference_forward_f32(x, edge_index, batch, params, num_graphs)
    assert jnp.allclose(out, ref_f32, rtol=5e-2, atol=5e-2), (out, ref_f32)

    print("KERNEL_OK")
</pallas_src>

<mosaic_0001>
module attributes {stable_mosaic.version = 11 : i64} {
  func.func @kernel(%arg0: memref<16x40xbf16, #tpu.memory_space<vmem>>, %arg1: memref<32x16xbf16, #tpu.memory_space<vmem>>, %arg2: memref<264x32xf32, #tpu.memory_space<vmem>>, %arg3: memref<232x50xf32, #tpu.memory_space<vmem>>, %arg4: memref<2x1xf32, #tpu.memory_space<vmem>>) attributes {dimension_semantics = [], scalar_prefetch = 0 : i64, scratch_operands = 0 : i64, tpu.core_type = #tpu.core_type<tc>} {
    %c0 = arith.constant 0 : index
    %c0_0 = arith.constant 0 : index
    %0 = vector.load %arg1[%c0, %c0_0] : memref<32x16xbf16, #tpu.memory_space<vmem>>, vector<16x16xbf16>
    %c16 = arith.constant 16 : index
    %c0_1 = arith.constant 0 : index
    %1 = vector.load %arg1[%c16, %c0_1] : memref<32x16xbf16, #tpu.memory_space<vmem>>, vector<2x16xbf16>
    %c0_2 = arith.constant 0 : index
    %c0_3 = arith.constant 0 : index
    %2 = vector.load %arg2[%c0_2, %c0_3] : memref<264x32xf32, #tpu.memory_space<vmem>>, vector<40x32xf32>
    %c40 = arith.constant 40 : index
    %c0_4 = arith.constant 0 : index
    %3 = vector.load %arg2[%c40, %c0_4] : memref<264x32xf32, #tpu.memory_space<vmem>>, vector<1x32xf32>
    %c48 = arith.constant 48 : index
    %c0_5 = arith.constant 0 : index
    %4 = vector.load %arg2[%c48, %c0_5] : memref<264x32xf32, #tpu.memory_space<vmem>>, vector<32x32xf32>
    %c80 = arith.constant 80 : index
    %c0_6 = arith.constant 0 : index
    %5 = vector.load %arg2[%c80, %c0_6] : memref<264x32xf32, #tpu.memory_space<vmem>>, vector<1x32xf32>
    %c88 = arith.constant 88 : index
    %c0_7 = arith.constant 0 : index
    %6 = vector.load %arg2[%c88, %c0_7] : memref<264x32xf32, #tpu.memory_space<vmem>>, vector<32x32xf32>
    %c128 = arith.constant 128 : index
    %c0_8 = arith.constant 0 : index
    %7 = vector.load %arg2[%c128, %c0_8] : memref<264x32xf32, #tpu.memory_space<vmem>>, vector<1x32xf32>
    %c136 = arith.constant 136 : index
    %c0_9 = arith.constant 0 : index
    %8 = vector.load %arg2[%c136, %c0_9] : memref<264x32xf32, #tpu.memory_space<vmem>>, vector<32x32xf32>
    %c168 = arith.constant 168 : index
    %c0_10 = arith.constant 0 : index
    %9 = vector.load %arg2[%c168, %c0_10] : memref<264x32xf32, #tpu.memory_space<vmem>>, vector<1x32xf32>
    %c176 = arith.constant 176 : index
    %c0_11 = arith.constant 0 : index
    %10 = vector.load %arg2[%c176, %c0_11] : memref<264x32xf32, #tpu.memory_space<vmem>>, vector<32x32xf32>
    %c216 = arith.constant 216 : index
    %c0_12 = arith.constant 0 : index
    %11 = vector.load %arg2[%c216, %c0_12] : memref<264x32xf32, #tpu.memory_space<vmem>>, vector<1x32xf32>
    %c224 = arith.constant 224 : index
    %c0_13 = arith.constant 0 : index
    %12 = vector.load %arg2[%c224, %c0_13] : memref<264x32xf32, #tpu.memory_space<vmem>>, vector<32x32xf32>
    %c256 = arith.constant 256 : index
    %c0_14 = arith.constant 0 : index
    %13 = vector.load %arg2[%c256, %c0_14] : memref<264x32xf32, #tpu.memory_space<vmem>>, vector<1x32xf32>
    %c0_15 = arith.constant 0 : index
    %c0_16 = arith.constant 0 : index
    %14 = vector.load %arg3[%c0_15, %c0_16] : memref<232x50xf32, #tpu.memory_space<vmem>>, vector<96x50xf32>
    %c96 = arith.constant 96 : index
    %c0_17 = arith.constant 0 : index
    %15 = vector.load %arg3[%c96, %c0_17] : memref<232x50xf32, #tpu.memory_space<vmem>>, vector<1x50xf32>
    %c104 = arith.constant 104 : index
    %c0_18 = arith.constant 0 : index
    %16 = vector.load %arg3[%c104, %c0_18] : memref<232x50xf32, #tpu.memory_space<vmem>>, vector<50x50xf32>
    %c160 = arith.constant 160 : index
    %c0_19 = arith.constant 0 : index
    %17 = vector.load %arg3[%c160, %c0_19] : memref<232x50xf32, #tpu.memory_space<vmem>>, vector<1x50xf32>
    %c168_20 = arith.constant 168 : index
    %c0_21 = arith.constant 0 : index
    %18 = vector.load %arg3[%c168_20, %c0_21] : memref<232x50xf32, #tpu.memory_space<vmem>>, vector<50x50xf32>
    %c224_22 = arith.constant 224 : index
    %c0_23 = arith.constant 0 : index
    %19 = vector.load %arg3[%c224_22, %c0_23] : memref<232x50xf32, #tpu.memory_space<vmem>>, vector<1x50xf32>
    %c0_24 = arith.constant 0 : index
    %c0_25 = arith.constant 0 : index
    %20 = vector.load %arg0[%c0_24, %c0_25] : memref<16x40xbf16, #tpu.memory_space<vmem>>, vector<16x40xbf16>
    %cst = arith.constant dense<0.000000e+00> : vector<16x40xf32>
    %21 = tpu.matmul %0, %20, %cst {dimension_numbers = #tpu.dot_dimension_numbers<[1], [0], [0], [1], [0, 0, 1, 1], [], []>} : vector<16x16xbf16>, vector<16x40xbf16>, vector<16x40xf32> -> vector<16x40xf32>
    %22 = arith.truncf %21 : vector<16x40xf32> to vector<16x40xbf16>
    %23 = arith.truncf %2 : vector<40x32xf32> to vector<40x32xbf16>
    %cst_26 = arith.constant dense<0.000000e+00> : vector<16x32xf32>
    %24 = tpu.matmul %22, %23, %cst_26 {dimension_numbers = #tpu.dot_dimension_numbers<[1], [0], [0], [1], [0, 0, 1, 1], [], []>} : vector<16x40xbf16>, vector<40x32xbf16>, vector<16x32xf32> -> vector<16x32xf32>
    %25 = vector.broadcast %3 : vector<1x32xf32> to vector<16x32xf32>
    %26 = arith.addf %24, %25 : vector<16x32xf32>
    %cst_27 = arith.constant 0.000000e+00 : f32
    %27 = vector.broadcast %cst_27 : f32 to vector<16x32xf32>
    %28 = arith.maximumf %26, %27 : vector<16x32xf32>
    %29 = arith.truncf %28 : vector<16x32xf32> to vector<16x32xbf16>
    %30 = arith.truncf %4 : vector<32x32xf32> to vector<32x32xbf16>
    %cst_28 = arith.constant dense<0.000000e+00> : vector<16x32xf32>
    %31 = tpu.matmul %29, %30, %cst_28 {dimension_numbers = #tpu.dot_dimension_numbers<[1], [0], [0], [1], [0, 0, 1, 1], [], []>} : vector<16x32xbf16>, vector<32x32xbf16>, vector<16x32xf32> -> vector<16x32xf32>
    %32 = vector.broadcast %5 : vector<1x32xf32> to vector<16x32xf32>
    %33 = arith.addf %31, %32 : vector<16x32xf32>
    %cst_29 = arith.constant 0.000000e+00 : f32
    %34 = vector.broadcast %cst_29 : f32 to vector<16x32xf32>
    %35 = arith.maximumf %33, %34 : vector<16x32xf32>
    %36 = arith.truncf %35 : vector<16x32xf32> to vector<16x32xbf16>
    %cst_30 = arith.constant dense<0.000000e+00> : vector<16x32xf32>
    %37 = tpu.matmul %0, %36, %cst_30 {dimension_numbers = #tpu.dot_dimension_numbers<[1], [0], [0], [1], [0, 0, 1, 1], [], []>} : vector<16x16xbf16>, vector<16x32xbf16>, vector<16x32xf32> -> vector<16x32xf32>
    %38 = arith.truncf %37 : vector<16x32xf32> to vector<16x32xbf16>
    %39 = arith.truncf %6 : vector<32x32xf32> to vector<32x32xbf16>
    %cst_31 = arith.constant dense<0.000000e+00> : vector<16x32xf32>
    %40 = tpu.matmul %38, %39, %cst_31 {dimension_numbers = #tpu.dot_dimension_numbers<[1], [0], [0], [1], [0, 0, 1, 1], [], []>} : vector<16x32xbf16>, vector<32x32xbf16>, vector<16x32xf32> -> vector<16x32xf32>
    %41 = vector.broadcast %7 : vector<1x32xf32> to vector<16x32xf32>
    %42 = arith.addf %40, %41 : vector<16x32xf32>
    %cst_32 = arith.constant 0.000000e+00 : f32
    %43 = vector.broadcast %cst_32 : f32 to vector<16x32xf32>
    %44 = arith.maximumf %42, %43 : vector<16x32xf32>
    %45 = arith.truncf %44 : vector<16x32xf32> to vector<16x32xbf16>
    %46 = arith.truncf %8 : vector<32x32xf32> to vector<32x32xbf16>
    %cst_33 = arith.constant dense<0.000000e+00> : vector<16x32xf32>
    %47 = tpu.matmul %45, %46, %cst_33 {dimension_numbers = #tpu.dot_dimension_numbers<[1], [0], [0], [1], [0, 0, 1, 1], [], []>} : vector<16x32xbf16>, vector<32x32xbf16>, vector<16x32xf32> -> vector<16x32xf32>
    %48 = vector.broadcast %9 : vector<1x32xf32> to vector<16x32xf32>
    %49 = arith.addf %47, %48 : vector<16x32xf32>
    %cst_34 = arith.constant 0.000000e+00 : f32
    %50 = vector.broadcast %cst_34 : f32 to vector<16x32xf32>
    %51 = arith.maximumf %49, %50 : vector<16x32xf32>
    %52 = arith.truncf %51 : vector<16x32xf32> to vector<16x32xbf16>
    %cst_35 = arith.constant dense<0.000000e+00> : vector<16x32xf32>
    %53 = tpu.matmul %0, %52, %cst_35 {dimension_numbers = #tpu.dot_dimension_numbers<[1], [0], [0], [1], [0, 0, 1, 1], [], []>} : vector<16x16xbf16>, vector<16x32xbf16>, vector<16x32xf32> -> vector<16x32xf32>
    %54 = arith.truncf %53 : vector<16x32xf32> to vector<16x32xbf16>
    %55 = arith.truncf %10 : vector<32x32xf32> to vector<32x32xbf16>
    %cst_36 = arith.constant dense<0.000000e+00> : vector<16x32xf32>
    %56 = tpu.matmul %54, %55, %cst_36 {dimension_numbers = #tpu.dot_dimension_numbers<[1], [0], [0], [1], [0, 0, 1, 1], [], []>} : vector<16x32xbf16>, vector<32x32xbf16>, vector<16x32xf32> -> vector<16x32xf32>
    %57 = vector.broadcast %11 : vector<1x32xf32> to vector<16x32xf32>
    %58 = arith.addf %56, %57 : vector<16x32xf32>
    %cst_37 = arith.constant 0.000000e+00 : f32
    %59 = vector.broadcast %cst_37 : f32 to vector<16x32xf32>
    %60 = arith.maximumf %58, %59 : vector<16x32xf32>
    %61 = arith.truncf %60 : vector<16x32xf32> to vector<16x32xbf16>
    %62 = arith.truncf %12 : vector<32x32xf32> to vector<32x32xbf16>
    %cst_38 = arith.constant dense<0.000000e+00> : vector<16x32xf32>
    %63 = tpu.matmul %61, %62, %cst_38 {dimension_numbers = #tpu.dot_dimension_numbers<[1], [0], [0], [1], [0, 0, 1, 1], [], []>} : vector<16x32xbf16>, vector<32x32xbf16>, vector<16x32xf32> -> vector<16x32xf32>
    %64 = vector.broadcast %13 : vector<1x32xf32> to vector<16x32xf32>
    %65 = arith.addf %63, %64 : vector<16x32xf32>
    %cst_39 = arith.constant 0.000000e+00 : f32
    %66 = vector.broadcast %cst_39 : f32 to vector<16x32xf32>
    %67 = arith.maximumf %65, %66 : vector<16x32xf32>
    %68 = arith.truncf %35 : vector<16x32xf32> to vector<16x32xbf16>
    %69 = vector.extract_strided_slice %14 {offsets = [0, 0], sizes = [32, 50], strides = [1, 1]} : vector<96x50xf32> to vector<32x50xf32>
    %70 = arith.truncf %69 : vector<32x50xf32> to vector<32x50xbf16>
    %cst_40 = arith.constant dense<0.000000e+00> : vector<16x50xf32>
    %71 = tpu.matmul %68, %70, %cst_40 {dimension_numbers = #tpu.dot_dimension_numbers<[1], [0], [0], [1], [0, 0, 1, 1], [], []>} : vector<16x32xbf16>, vector<32x50xbf16>, vector<16x50xf32> -> vector<16x50xf32>
    %72 = arith.truncf %51 : vector<16x32xf32> to vector<16x32xbf16>
    %73 = vector.extract_strided_slice %14 {offsets = [32, 0], sizes = [32, 50], strides = [1, 1]} : vector<96x50xf32> to vector<32x50xf32>
    %74 = arith.truncf %73 : vector<32x50xf32> to vector<32x50xbf16>
    %cst_41 = arith.constant dense<0.000000e+00> : vector<16x50xf32>
    %75 = tpu.matmul %72, %74, %cst_41 {dimension_numbers = #tpu.dot_dimension_numbers<[1], [0], [0], [1], [0, 0, 1, 1], [], []>} : vector<16x32xbf16>, vector<32x50xbf16>, vector<16x50xf32> -> vector<16x50xf32>
    %76 = arith.addf %71, %75 : vector<16x50xf32>
    %77 = arith.truncf %67 : vector<16x32xf32> to vector<16x32xbf16>
    %78 = vector.extract_strided_slice %14 {offsets = [64, 0], sizes = [32, 50], strides = [1, 1]} : vector<96x50xf32> to vector<32x50xf32>
    %79 = arith.truncf %78 : vector<32x50xf32> to vector<32x50xbf16>
    %cst_42 = arith.constant dense<0.000000e+00> : vector<16x50xf32>
    %80 = tpu.matmul %77, %79, %cst_42 {dimension_numbers = #tpu.dot_dimension_numbers<[1], [0], [0], [1], [0, 0, 1, 1], [], []>} : vector<16x32xbf16>, vector<32x50xbf16>, vector<16x50xf32> -> vector<16x50xf32>
    %81 = arith.addf %76, %80 : vector<16x50xf32>
    %82 = arith.truncf %81 : vector<16x50xf32> to vector<16x50xbf16>
    %cst_43 = arith.constant dense<0.000000e+00> : vector<2x50xf32>
    %83 = tpu.matmul %1, %82, %cst_43 {dimension_numbers = #tpu.dot_dimension_numbers<[1], [0], [0], [1], [0, 0, 1, 1], [], []>} : vector<2x16xbf16>, vector<16x50xbf16>, vector<2x50xf32> -> vector<2x50xf32>
    %84 = vector.broadcast %15 : vector<1x50xf32> to vector<2x50xf32>
    %85 = arith.addf %83, %84 : vector<2x50xf32>
    %cst_44 = arith.constant 0.000000e+00 : f32
    %86 = vector.broadcast %cst_44 : f32 to vector<2x50xf32>
    %87 = arith.maximumf %85, %86 : vector<2x50xf32>
    %88 = arith.truncf %87 : vector<2x50xf32> to vector<2x50xbf16>
    %89 = arith.truncf %16 : vector<50x50xf32> to vector<50x50xbf16>
    %cst_45 = arith.constant dense<0.000000e+00> : vector<2x50xf32>
    %90 = tpu.matmul %88, %89, %cst_45 {dimension_numbers = #tpu.dot_dimension_numbers<[1], [0], [0], [1], [0, 0, 1, 1], [], []>} : vector<2x50xbf16>, vector<50x50xbf16>, vector<2x50xf32> -> vector<2x50xf32>
    %91 = vector.broadcast %17 : vector<1x50xf32> to vector<2x50xf32>
    %92 = arith.addf %90, %91 : vector<2x50xf32>
    %cst_46 = arith.constant 0.000000e+00 : f32
    %93 = vector.broadcast %cst_46 : f32 to vector<2x50xf32>
    %94 = arith.maximumf %92, %93 : vector<2x50xf32>
    %95 = arith.truncf %94 : vector<2x50xf32> to vector<2x50xbf16>
    %96 = arith.truncf %18 : vector<50x50xf32> to vector<50x50xbf16>
    %cst_47 = arith.constant dense<0.000000e+00> : vector<2x50xf32>
    %97 = tpu.matmul %95, %96, %cst_47 {dimension_numbers = #tpu.dot_dimension_numbers<[1], [0], [0], [1], [0, 0, 1, 1], [], []>} : vector<2x50xbf16>, vector<50x50xbf16>, vector<2x50xf32> -> vector<2x50xf32>
    %98 = vector.broadcast %19 : vector<1x50xf32> to vector<2x50xf32>
    %99 = arith.addf %97, %98 : vector<2x50xf32>
    %100 = vector.extract_strided_slice %99 {offsets = [0, 0], sizes = [2, 1], strides = [1, 1]} : vector<2x50xf32> to vector<2x1xf32>
    %cst_48 = arith.constant 0.000000e+00 : f32
    %101 = vector.broadcast %cst_48 : f32 to vector<2x1xf32>
    %102 = arith.subf %101, %100 : vector<2x1xf32>
    %103 = math.exp %102 : vector<2x1xf32>
    %cst_49 = arith.constant 1.000000e+00 : f32
    %104 = vector.broadcast %cst_49 : f32 to vector<2x1xf32>
    %105 = arith.addf %104, %103 : vector<2x1xf32>
    %106 = tpu.reciprocal %105 {approx = true} : vector<2x1xf32> -> vector<2x1xf32>
    %c0_50 = arith.constant 0 : index
    %c0_51 = arith.constant 0 : index
    %107 = vector.load %arg4[%c0_50, %c0_51] : memref<2x1xf32, #tpu.memory_space<vmem>>, vector<2x1xf32>
    tpu.vector_store %arg4[%c0_50, %c0_51], %106 {strides = array<i32>} : memref<2x1xf32, #tpu.memory_space<vmem>>, vector<2x1xf32>,
    return
  }
}

</mosaic_0001>

<llo_original>
// kernel: tpu_custom_call.1
$region0: #{tpu_custom_call.1}
  #allocation0 [shape = 'u32[]', space=smem, size = 0x4, offset = 0x4, fixed_abs, tag = 'smem constant byte address 0x4 - core index']
  #allocation1 [shape = 'u32[144,128]{1,0:T(1,128)}', space=vmem, size = 0x12000, scoped, tag = 'internal scratch']
  %s0 = inlined_call_operand.vmem [shape: bf16[16,40], index: 0, kind: input, shape index: {}]
  %s1 = inlined_call_operand.vmem [shape: bf16[32,16], index: 1, kind: input, shape index: {}]
  %s2 = inlined_call_operand.vmem [shape: f32[264,32], index: 2, kind: input, shape index: {}]
  %s3 = inlined_call_operand.vmem [shape: f32[232,50], index: 3, kind: input, shape index: {}]
  %s4 = inlined_call_operand.vmem [shape: f32[2,1], index: 4, kind: output, shape index: {}]
  %s5 = sld [smem:[#allocation0]]
  $region26: #{tpu_custom_call.1} parent=0
    _
  %s7 = ssub.s32 1, %s5
  %s8 = scalar_select 0, %s7, %s5
  // Predicated region
  $region2: #{tpu_custom_call.1} parent=0 // pred_check
    _
  $region3: #{tpu_custom_call.1} parent=0 // pred_check_branch
    %10 = sbr.rel (0) target = $region5
  $region4: #{tpu_custom_call.1} parent=0 // pred_region
    _
  $region5: #{tpu_custom_call.1} parent=0 // pred_fallthru
    _
  // Predicated region
  $region6: #{tpu_custom_call.1} parent=0 // pred_check
    _
  $region7: #{tpu_custom_call.1} parent=0 // pred_check_branch
    %12 = sbr.rel (0) target = $region9
  $region8: #{tpu_custom_call.1} parent=0 // pred_region
    _
  $region9: #{tpu_custom_call.1} parent=0 // pred_fallthru
    _
  // Predicated region
  $region10: #{tpu_custom_call.1} parent=0 // pred_check
    _
  $region11: #{tpu_custom_call.1} parent=0 // pred_check_branch
    %14 = sbr.rel (0) target = $region13
  $region12: #{tpu_custom_call.1} parent=0 // pred_region
    _
  $region13: #{tpu_custom_call.1} parent=0 // pred_fallthru
    _
  // Predicated region
  $region14: #{tpu_custom_call.1} parent=0 // pred_check
    _
  $region15: #{tpu_custom_call.1} parent=0 // pred_check_branch
    %16 = sbr.rel (0) target = $region17
  $region16: #{tpu_custom_call.1} parent=0 // pred_region
    _
  $region17: #{tpu_custom_call.1} parent=0 // pred_fallthru
    _
  %v18 = vld [vmem:[%s1] sm:$0xf]
  %v19 = vld [vmem:[%s1 + $0x4] sm:$0xf]
  %v20 = vld [vmem:[%s1 + $0x8] sm:$0x1]
  %v21 = vld [vmem:[%s2] sm:$0xff]
  %v22 = vld [vmem:[%s2 + $0x8] sm:$0xff]
  %v23 = vld [vmem:[%s2 + $0x10] sm:$0xff]
  %v24 = vld [vmem:[%s2 + $0x18] sm:$0xff]
  %v25 = vld [vmem:[%s2 + $0x20] sm:$0xff]
  %v26 = vld [vmem:[%s2 + $0x28] sm:$0x1]
  %v27 = vld [vmem:[%s2 + $0x30] sm:$0xff]
  %v28 = vld [vmem:[%s2 + $0x38] sm:$0xff]
  %v29 = vld [vmem:[%s2 + $0x40] sm:$0xff]
  %v30 = vld [vmem:[%s2 + $0x48] sm:$0xff]
  %v31 = vld [vmem:[%s2 + $0x50] sm:$0x1]
  %v32 = vld [vmem:[%s2 + $0x58] sm:$0xff]
  %v33 = vld [vmem:[%s2 + $0x60] sm:$0xff]
  %v34 = vld [vmem:[%s2 + $0x68] sm:$0xff]
  %v35 = vld [vmem:[%s2 + $0x70] sm:$0xff]
  %v36 = vld [vmem:[%s2 + $0x80] sm:$0x1]
  %v37 = vld [vmem:[%s2 + $0x88] sm:$0xff]
  %v38 = vld [vmem:[%s2 + $0x90] sm:$0xff]
  %v39 = vld [vmem:[%s2 + $0x98] sm:$0xff]
  %v40 = vld [vmem:[%s2 + $0xa0] sm:$0xff]
  %v41 = vld [vmem:[%s2 + $0xa8] sm:$0x1]
  %v42 = vld [vmem:[%s2 + $0xb0] sm:$0xff]
  %v43 = vld [vmem:[%s2 + $0xb8] sm:$0xff]
  %v44 = vld [vmem:[%s2 + $0xc0] sm:$0xff]
  %v45 = vld [vmem:[%s2 + $0xc8] sm:$0xff]
  %v46 = vld [vmem:[%s2 + $0xd8] sm:$0x1]
  %v47 = vld [vmem:[%s2 + $0xe0] sm:$0xff]
  %v48 = vld [vmem:[%s2 + $0xe8] sm:$0xff]
  %v49 = vld [vmem:[%s2 + $0xf0] sm:$0xff]
  %v50 = vld [vmem:[%s2 + $0xf8] sm:$0xff]
  %v51 = vld [vmem:[%s2 + $0x100] sm:$0x1]
  %v52 = vld [vmem:[%s3] sm:$0xff]
  %v53 = vld [vmem:[%s3 + $0x8] sm:$0xff]
  %v54 = vld [vmem:[%s3 + $0x10] sm:$0xff]
  %v55 = vld [vmem:[%s3 + $0x18] sm:$0xff]
  %v56 = vld [vmem:[%s3 + $0x20] sm:$0xff]
  %v57 = vld [vmem:[%s3 + $0x28] sm:$0xff]
  %v58 = vld [vmem:[%s3 + $0x30] sm:$0xff]
  %v59 = vld [vmem:[%s3 + $0x38] sm:$0xff]
  %v60 = vld [vmem:[%s3 + $0x40] sm:$0xff]
  %v61 = vld [vmem:[%s3 + $0x48] sm:$0xff]
  %v62 = vld [vmem:[%s3 + $0x50] sm:$0xff]
  %v63 = vld [vmem:[%s3 + $0x58] sm:$0xff]
  %v64 = vld [vmem:[%s3 + $0x60] sm:$0x1]
  %v65 = vld [vmem:[%s3 + $0x68] sm:$0xff]
  %v66 = vld [vmem:[%s3 + $0x70] sm:$0xff]
  %v67 = vld [vmem:[%s3 + $0x78] sm:$0xff]
  %v68 = vld [vmem:[%s3 + $0x80] sm:$0xff]
  %v69 = vld [vmem:[%s3 + $0x88] sm:$0xff]
  %v70 = vld [vmem:[%s3 + $0x90] sm:$0xff]
  %v71 = vld [vmem:[%s3 + $0x98] sm:$0x3]
  %v72 = vld [vmem:[%s3 + $0xa0] sm:$0x1]
  %v73 = vld [vmem:[%s3 + $0xa8] sm:$0xff]
  %v74 = vld [vmem:[%s3 + $0xb0] sm:$0xff]
  %v75 = vld [vmem:[%s3 + $0xb8] sm:$0xff]
  %v76 = vld [vmem:[%s3 + $0xc0] sm:$0xff]
  %v77 = vld [vmem:[%s3 + $0xc8] sm:$0xff]
  %v78 = vld [vmem:[%s3 + $0xd0] sm:$0xff]
  %v79 = vld [vmem:[%s3 + $0xd8] sm:$0x3]
  %v80 = vld [vmem:[%s3 + $0xe0] sm:$0x1]
  %v81 = vld [vmem:[%s0] sm:$0xf]
  %v82 = vld [vmem:[%s0 + $0x4] sm:$0xf]
  %v85 = vunpack.c.l.b16 %v18
  %v86 = vunpack.c.l.b16 %v19
  %v87 = vpack.c.b16 %v86, %v85
  %v90 = vunpack.c.l.b16 %v81
  %v91 = vunpack.c.l.b16 %v82
  %v92 = vpack.c.b16 %v91, %v90
  %vm94 = vcmask 130048
  %v96 = vsel %vm94, %v87, 0
  %98 = vmatprep.subr.bf16.mxu0 0
  %99 = vmatpush1.bf16.msra.mxu0 %v92
  %100 = vmatprep.subr.bf16.mxu0 0
  %101 = vmatpush1.bf16.msra.mxu0 0
  %102 = vmatprep.subr.bf16.mxu0 0
  %103 = vmatpush1.bf16.msra.mxu0 0
  %104 = vmatprep.subr.bf16.mxu0 0
  %105 = vmatpush1.bf16.msra.mxu0 0
  %106 = vmatprep.subr.bf16.mxu0 0
  %107 = vmatpush1.bf16.msra.mxu0 0
  %108 = vmatprep.subr.bf16.mxu0 0
  %109 = vmatpush1.bf16.msra.mxu0 0
  %110 = vmatprep.subr.bf16.mxu0 0
  %111 = vmatpush1.bf16.msra.mxu0 0
  %112 = vmatprep.subr.bf16.mxu0 0
  %113 = vmatpush1.bf16.msra.mxu0 0
  %114 = vmatprep.subr.bf16.mxu0 0
  %115 = vmatpush1.bf16.msra.mxu0 0
  %116 = vmatprep.subr.bf16.mxu0 0
  %117 = vmatpush1.bf16.msra.mxu0 0
  %118 = vmatprep.subr.bf16.mxu0 0
  %119 = vmatpush1.bf16.msra.mxu0 0
  %120 = vmatprep.subr.bf16.mxu0 0
  %121 = vmatpush1.bf16.msra.mxu0 0
  %122 = vmatprep.subr.bf16.mxu0 0
  %123 = vmatpush1.bf16.msra.mxu0 0
  %124 = vmatprep.subr.bf16.mxu0 0
  %125 = vmatpush1.bf16.msra.mxu0 0
  %126 = vmatprep.subr.bf16.mxu0 0
  %127 = vmatpush1.bf16.msra.mxu0 0
  %128 = vmatprep.subr.bf16.mxu0 0
  %129 = vmatpush1.bf16.msra.mxu0 0
  %130 = vmatprep.mubr.bf16.mxu0 0
  %131 = vmatmul.mubr.bf16.gmra.mrb[0].mxu0 %v96
  %v132 = vpop.f32.mrb[0].mxu0
  %v133 = vadd.f32 0.0, %v132
  %v134 = vpop.f32.mrb[0].mxu0
  %v135 = vpop.f32.mrb[0].mxu0
  %v136 = vadd.f32 0.0, %v135
  %v137 = vpop.f32.mrb[0].mxu0
  %138 = vdwg.mxu0
  %v139 = vpack.c.bf16 %v136, %v133
  %v140 = vpack.c.bf16 %v22, %v21
  %v141 = vpack.c.bf16 %v24, %v23
  %v142 = vpack.c.bf16 %v25, %v25
  %v143 = vlaneseq
  %v144 = vshrl.u32 %v143, 7
  %v145 = vsub.s32 0, %v144
  %v146 = vrot.slane %v26, %v145
  %vm147 = vcmask 326656
  %v149 = vsel %vm147, %v139, 0
  %vm151 = vcmask 1043456
  %v153 = vsel %vm151, %v142, 0
  %155 = vmatprep.subr.bf16.mxu0 0
  %156 = vmatpush1.bf16.msra.mxu0 %v140
  %157 = vmatprep.subr.bf16.mxu0 0
  %158 = vmatpush1.bf16.msra.mxu0 %v141
  %159 = vmatprep.subr.bf16.mxu0 0
  %160 = vmatpush1.bf16.msra.mxu0 %v153
  %161 = vmatprep.subr.bf16.mxu0 0
  %162 = vmatpush1.bf16.msra.mxu0 0
  %163 = vmatprep.subr.bf16.mxu0 0
  %164 = vmatpush1.bf16.msra.mxu0 0
  %165 = vmatprep.subr.bf16.mxu0 0
  %166 = vmatpush1.bf16.msra.mxu0 0
  %167 = vmatprep.subr.bf16.mxu0 0
  %168 = vmatpush1.bf16.msra.mxu0 0
  %169 = vmatprep.subr.bf16.mxu0 0
  %170 = vmatpush1.bf16.msra.mxu0 0
  %171 = vmatprep.subr.bf16.mxu0 0
  %172 = vmatpush1.bf16.msra.mxu0 0
  %173 = vmatprep.subr.bf16.mxu0 0
  %174 = vmatpush1.bf16.msra.mxu0 0
  %175 = vmatprep.subr.bf16.mxu0 0
  %176 = vmatpush1.bf16.msra.mxu0 0
  %177 = vmatprep.subr.bf16.mxu0 0
  %178 = vmatpush1.bf16.msra.mxu0 0
  %179 = vmatprep.subr.bf16.mxu0 0
  %180 = vmatpush1.bf16.msra.mxu0 0
  %181 = vmatprep.subr.bf16.mxu0 0
  %182 = vmatpush1.bf16.msra.mxu0 0
  %183 = vmatprep.subr.bf16.mxu0 0
  %184 = vmatpush1.bf16.msra.mxu0 0
  %185 = vmatprep.subr.bf16.mxu0 0
  %186 = vmatpush1.bf16.msra.mxu0 0
  %187 = vmatprep.mubr.bf16.mxu0 0
  %188 = vmatmul.mubr.bf16.gmra.mrb[0].mxu0 %v149
  %v189 = vpop.f32.mrb[0].mxu0
  %v190 = vadd.f32 %v146, %v189
  %v191 = vpop.f32.mrb[0].mxu0
  %v192 = vpop.f32.mrb[0].mxu0
  %v193 = vadd.f32 %v146, %v192
  %v194 = vpop.f32.mrb[0].mxu0
  %195 = vdwg.mxu0
  %v196 = vmax.f32 %v190, 0.0
  %v197 = vmax.f32 %v193, 0.0
  %v198 = vpack.c.bf16 %v197, %v196
  %v199 = vpack.c.bf16 %v28, %v27
  %v200 = vpack.c.bf16 %v30, %v29
  %v201 = vlaneseq
  %v202 = vshrl.u32 %v201, 7
  %v203 = vsub.s32 0, %v202
  %v204 = vrot.slane %v31, %v203
  %vm205 = vcmask 261120
  %v207 = vsel %vm205, %v198, 0
  %209 = vmatprep.subr.bf16.mxu0 0
  %210 = vmatpush1.bf16.msra.mxu0 %v199
  %211 = vmatprep.subr.bf16.mxu0 0
  %212 = vmatpush1.bf16.msra.mxu0 %v200
  %213 = vmatprep.subr.bf16.mxu0 0
  %214 = vmatpush1.bf16.msra.mxu0 0
  %215 = vmatprep.subr.bf16.mxu0 0
  %216 = vmatpush1.bf16.msra.mxu0 0
  %217 = vmatprep.subr.bf16.mxu0 0
  %218 = vmatpush1.bf16.msra.mxu0 0
  %219 = vmatprep.subr.bf16.mxu0 0
  %220 = vmatpush1.bf16.msra.mxu0 0
  %221 = vmatprep.subr.bf16.mxu0 0
  %222 = vmatpush1.bf16.msra.mxu0 0
  %223 = vmatprep.subr.bf16.mxu0 0
  %224 = vmatpush1.bf16.msra.mxu0 0
  %225 = vmatprep.subr.bf16.mxu0 0
  %226 = vmatpush1.bf16.msra.mxu0 0
  %227 = vmatprep.subr.bf16.mxu0 0
  %228 = vmatpush1.bf16.msra.mxu0 0
  %229 = vmatprep.subr.bf16.mxu0 0
  %230 = vmatpush1.bf16.msra.mxu0 0
  %231 = vmatprep.subr.bf16.mxu0 0
  %232 = vmatpush1.bf16.msra.mxu0 0
  %233 = vmatprep.subr.bf16.mxu0 0
  %234 = vmatpush1.bf16.msra.mxu0 0
  %235 = vmatprep.subr.bf16.mxu0 0
  %236 = vmatpush1.bf16.msra.mxu0 0
  %237 = vmatprep.subr.bf16.mxu0 0
  %238 = vmatpush1.bf16.msra.mxu0 0
  %239 = vmatprep.subr.bf16.mxu0 0
  %240 = vmatpush1.bf16.msra.mxu0 0
  %241 = vmatprep.mubr.bf16.mxu0 0
  %242 = vmatmul.mubr.bf16.gmra.mrb[0].mxu0 %v207
  %v243 = vpop.f32.mrb[0].mxu0
  %v244 = vadd.f32 %v204, %v243
  %v245 = vpop.f32.mrb[0].mxu0
  %v246 = vpop.f32.mrb[0].mxu0
  %v247 = vadd.f32 %v204, %v246
  %v248 = vpop.f32.mrb[0].mxu0
  %249 = vdwg.mxu0
  %v250 = vmax.f32 %v244, 0.0
  %v251 = vmax.f32 %v247, 0.0
  %v252 = vpack.c.bf16 %v251, %v250
  %253 = vmatprep.subr.bf16.mxu0 0
  %254 = vmatpush1.bf16.msra.mxu0 %v252
  %255 = vmatprep.subr.bf16.mxu0 0
  %256 = vmatpush1.bf16.msra.mxu0 0
  %257 = vmatprep.subr.bf16.mxu0 0
  %258 = vmatpush1.bf16.msra.mxu0 0
  %259 = vmatprep.subr.bf16.mxu0 0
  %260 = vmatpush1.bf16.msra.mxu0 0
  %261 = vmatprep.subr.bf16.mxu0 0
  %262 = vmatpush1.bf16.msra.mxu0 0
  %263 = vmatprep.subr.bf16.mxu0 0
  %264 = vmatpush1.bf16.msra.mxu0 0
  %265 = vmatprep.subr.bf16.mxu0 0
  %266 = vmatpush1.bf16.msra.mxu0 0
  %267 = vmatprep.subr.bf16.mxu0 0
  %268 = vmatpush1.bf16.msra.mxu0 0
  %269 = vmatprep.subr.bf16.mxu0 0
  %270 = vmatpush1.bf16.msra.mxu0 0
  %271 = vmatprep.subr.bf16.mxu0 0
  %272 = vmatpush1.bf16.msra.mxu0 0
  %273 = vmatprep.subr.bf16.mxu0 0
  %274 = vmatpush1.bf16.msra.mxu0 0
  %275 = vmatprep.subr.bf16.mxu0 0
  %276 = vmatpush1.bf16.msra.mxu0 0
  %277 = vmatprep.subr.bf16.mxu0 0
  %278 = vmatpush1.bf16.msra.mxu0 0
  %279 = vmatprep.subr.bf16.mxu0 0
  %280 = vmatpush1.bf16.msra.mxu0 0
  %281 = vmatprep.subr.bf16.mxu0 0
  %282 = vmatpush1.bf16.msra.mxu0 0
  %283 = vmatprep.subr.bf16.mxu0 0
  %284 = vmatpush1.bf16.msra.mxu0 0
  %285 = vmatprep.mubr.bf16.mxu0 0
  %286 = vmatmul.mubr.bf16.gmra.mrb[0].mxu0 %v96
  %v287 = vpop.f32.mrb[0].mxu0
  %v288 = vadd.f32 0.0, %v287
  %v289 = vpop.f32.mrb[0].mxu0
  %v290 = vpop.f32.mrb[0].mxu0
  %v291 = vadd.f32 0.0, %v290
  %v292 = vpop.f32.mrb[0].mxu0
  %293 = vdwg.mxu0
  %v294 = vpack.c.bf16 %v291, %v288
  %v295 = vpack.c.bf16 %v33, %v32
  %v296 = vpack.c.bf16 %v35, %v34
  %v297 = vlaneseq
  %v298 = vshrl.u32 %v297, 7
  %v299 = vsub.s32 0, %v298
  %v300 = vrot.slane %v36, %v299
  %v302 = vsel %vm205, %v294, 0
  %304 = vmatprep.subr.bf16.mxu0 0
  %305 = vmatpush1.bf16.msra.mxu0 %v295
  %306 = vmatprep.subr.bf16.mxu0 0
  %307 = vmatpush1.bf16.msra.mxu0 %v296
  %308 = vmatprep.subr.bf16.mxu0 0
  %309 = vmatpush1.bf16.msra.mxu0 0
  %310 = vmatprep.subr.bf16.mxu0 0
  %311 = vmatpush1.bf16.msra.mxu0 0
  %312 = vmatprep.subr.bf16.mxu0 0
  %313 = vmatpush1.bf16.msra.mxu0 0
  %314 = vmatprep.subr.bf16.mxu0 0
  %315 = vmatpush1.bf16.msra.mxu0 0
  %316 = vmatprep.subr.bf16.mxu0 0
  %317 = vmatpush1.bf16.msra.mxu0 0
  %318 = vmatprep.subr.bf16.mxu0 0
  %319 = vmatpush1.bf16.msra.mxu0 0
  %320 = vmatprep.subr.bf16.mxu0 0
  %321 = vmatpush1.bf16.msra.mxu0 0
  %322 = vmatprep.subr.bf16.mxu0 0
  %323 = vmatpush1.bf16.msra.mxu0 0
  %324 = vmatprep.subr.bf16.mxu0 0
  %325 = vmatpush1.bf16.msra.mxu0 0
  %326 = vmatprep.subr.bf16.mxu0 0
  %327 = vmatpush1.bf16.msra.mxu0 0
  %328 = vmatprep.subr.bf16.mxu0 0
  %329 = vmatpush1.bf16.msra.mxu0 0
  %330 = vmatprep.subr.bf16.mxu0 0
  %331 = vmatpush1.bf16.msra.mxu0 0
  %332 = vmatprep.subr.bf16.mxu0 0
  %333 = vmatpush1.bf16.msra.mxu0 0
  %334 = vmatprep.subr.bf16.mxu0 0
  %335 = vmatpush1.bf16.msra.mxu0 0
  %336 = vmatprep.mubr.bf16.mxu0 0
  %337 = vmatmul.mubr.bf16.gmra.mrb[0].mxu0 %v302
  %v338 = vpop.f32.mrb[0].mxu0
  %v339 = vadd.f32 %v300, %v338
  %v340 = vpop.f32.mrb[0].mxu0
  %v341 = vpop.f32.mrb[0].mxu0
  %v342 = vadd.f32 %v300, %v341
  %v343 = vpop.f32.mrb[0].mxu0
  %344 = vdwg.mxu0
  %v345 = vmax.f32 %v339, 0.0
  %v346 = vmax.f32 %v342, 0.0
  %v347 = vpack.c.bf16 %v346, %v345
  %v348 = vpack.c.bf16 %v38, %v37
  %v349 = vpack.c.bf16 %v40, %v39
  %v350 = vlaneseq
  %v351 = vshrl.u32 %v350, 7
  %v352 = vsub.s32 0, %v351
  %v353 = vrot.slane %v41, %v352
  %v355 = vsel %vm205, %v347, 0
  %357 = vmatprep.subr.bf16.mxu0 0
  %358 = vmatpush1.bf16.msra.mxu0 %v348
  %359 = vmatprep.subr.bf16.mxu0 0
  %360 = vmatpush1.bf16.msra.mxu0 %v349
  %361 = vmatprep.subr.bf16.mxu0 0
  %362 = vmatpush1.bf16.msra.mxu0 0
  %363 = vmatprep.subr.bf16.mxu0 0
  %364 = vmatpush1.bf16.msra.mxu0 0
  %365 = vmatprep.subr.bf16.mxu0 0
  %366 = vmatpush1.bf16.msra.mxu0 0
  %367 = vmatprep.subr.bf16.mxu0 0
  %368 = vmatpush1.bf16.msra.mxu0 0
  %369 = vmatprep.subr.bf16.mxu0 0
  %370 = vmatpush1.bf16.msra.mxu0 0
  %371 = vmatprep.subr.bf16.mxu0 0
  %372 = vmatpush1.bf16.msra.mxu0 0
  %373 = vmatprep.subr.bf16.mxu0 0
  %374 = vmatpush1.bf16.msra.mxu0 0
  %375 = vmatprep.subr.bf16.mxu0 0
  %376 = vmatpush1.bf16.msra.mxu0 0
  %377 = vmatprep.subr.bf16.mxu0 0
  %378 = vmatpush1.bf16.msra.mxu0 0
  %379 = vmatprep.subr.bf16.mxu0 0
  %380 = vmatpush1.bf16.msra.mxu0 0
  %381 = vmatprep.subr.bf16.mxu0 0
  %382 = vmatpush1.bf16.msra.mxu0 0
  %383 = vmatprep.subr.bf16.mxu0 0
  %384 = vmatpush1.bf16.msra.mxu0 0
  %385 = vmatprep.subr.bf16.mxu0 0
  %386 = vmatpush1.bf16.msra.mxu0 0
  %387 = vmatprep.subr.bf16.mxu0 0
  %388 = vmatpush1.bf16.msra.mxu0 0
  %389 = vmatprep.mubr.bf16.mxu0 0
  %390 = vmatmul.mubr.bf16.gmra.mrb[0].mxu0 %v355
  %v391 = vpop.f32.mrb[0].mxu0
  %v392 = vadd.f32 %v353, %v391
  %v393 = vpop.f32.mrb[0].mxu0
  %v394 = vpop.f32.mrb[0].mxu0
  %v395 = vadd.f32 %v353, %v394
  %v396 = vpop.f32.mrb[0].mxu0
  %397 = vdwg.mxu0
  %v398 = vmax.f32 %v392, 0.0
  %v399 = vmax.f32 %v395, 0.0
  %v400 = vpack.c.bf16 %v399, %v398
  %401 = vmatprep.subr.bf16.mxu0 0
  %402 = vmatpush1.bf16.msra.mxu0 %v400
  %403 = vmatprep.subr.bf16.mxu0 0
  %404 = vmatpush1.bf16.msra.mxu0 0
  %405 = vmatprep.subr.bf16.mxu0 0
  %406 = vmatpush1.bf16.msra.mxu0 0
  %407 = vmatprep.subr.bf16.mxu0 0
  %408 = vmatpush1.bf16.msra.mxu0 0
  %409 = vmatprep.subr.bf16.mxu0 0
  %410 = vmatpush1.bf16.msra.mxu0 0
  %411 = vmatprep.subr.bf16.mxu0 0
  %412 = vmatpush1.bf16.msra.mxu0 0
  %413 = vmatprep.subr.bf16.mxu0 0
  %414 = vmatpush1.bf16.msra.mxu0 0
  %415 = vmatprep.subr.bf16.mxu0 0
  %416 = vmatpush1.bf16.msra.mxu0 0
  %417 = vmatprep.subr.bf16.mxu0 0
  %418 = vmatpush1.bf16.msra.mxu0 0
  %419 = vmatprep.subr.bf16.mxu0 0
  %420 = vmatpush1.bf16.msra.mxu0 0
  %421 = vmatprep.subr.bf16.mxu0 0
  %422 = vmatpush1.bf16.msra.mxu0 0
  %423 = vmatprep.subr.bf16.mxu0 0
  %424 = vmatpush1.bf16.msra.mxu0 0
  %425 = vmatprep.subr.bf16.mxu0 0
  %426 = vmatpush1.bf16.msra.mxu0 0
  %427 = vmatprep.subr.bf16.mxu0 0
  %428 = vmatpush1.bf16.msra.mxu0 0
  %429 = vmatprep.subr.bf16.mxu0 0
  %430 = vmatpush1.bf16.msra.mxu0 0
  %431 = vmatprep.subr.bf16.mxu0 0
  %432 = vmatpush1.bf16.msra.mxu0 0
  %433 = vmatprep.mubr.bf16.mxu0 0
  %434 = vmatmul.mubr.bf16.gmra.mrb[0].mxu0 %v96
  %v435 = vpop.f32.mrb[0].mxu0
  %v436 = vadd.f32 0.0, %v435
  %v437 = vpop.f32.mrb[0].mxu0
  %v438 = vpop.f32.mrb[0].mxu0
  %v439 = vadd.f32 0.0, %v438
  %v440 = vpop.f32.mrb[0].mxu0
  %441 = vdwg.mxu0
  %v442 = vpack.c.bf16 %v439, %v436
  %v443 = vpack.c.bf16 %v43, %v42
  %v444 = vpack.c.bf16 %v45, %v44
  %v445 = vlaneseq
  %v446 = vshrl.u32 %v445, 7
  %v447 = vsub.s32 0, %v446
  %v448 = vrot.slane %v46, %v447
  %v450 = vsel %vm205, %v442, 0
  %452 = vmatprep.subr.bf16.mxu0 0
  %453 = vmatpush1.bf16.msra.mxu0 %v443
  %454 = vmatprep.subr.bf16.mxu0 0
  %455 = vmatpush1.bf16.msra.mxu0 %v444
  %456 = vmatprep.subr.bf16.mxu0 0
  %457 = vmatpush1.bf16.msra.mxu0 0
  %458 = vmatprep.subr.bf16.mxu0 0
  %459 = vmatpush1.bf16.msra.mxu0 0
  %460 = vmatprep.subr.bf16.mxu0 0
  %461 = vmatpush1.bf16.msra.mxu0 0
  %462 = vmatprep.subr.bf16.mxu0 0
  %463 = vmatpush1.bf16.msra.mxu0 0
  %464 = vmatprep.subr.bf16.mxu0 0
  %465 = vmatpush1.bf16.msra.mxu0 0
  %466 = vmatprep.subr.bf16.mxu0 0
  %467 = vmatpush1.bf16.msra.mxu0 0
  %468 = vmatprep.subr.bf16.mxu0 0
  %469 = vmatpush1.bf16.msra.mxu0 0
  %470 = vmatprep.subr.bf16.mxu0 0
  %471 = vmatpush1.bf16.msra.mxu0 0
  %472 = vmatprep.subr.bf16.mxu0 0
  %473 = vmatpush1.bf16.msra.mxu0 0
  %474 = vmatprep.subr.bf16.mxu0 0
  %475 = vmatpush1.bf16.msra.mxu0 0
  %476 = vmatprep.subr.bf16.mxu0 0
  %477 = vmatpush1.bf16.msra.mxu0 0
  %478 = vmatprep.subr.bf16.mxu0 0
  %479 = vmatpush1.bf16.msra.mxu0 0
  %480 = vmatprep.subr.bf16.mxu0 0
  %481 = vmatpush1.bf16.msra.mxu0 0
  %482 = vmatprep.subr.bf16.mxu0 0
  %483 = vmatpush1.bf16.msra.mxu0 0
  %484 = vmatprep.mubr.bf16.mxu0 0
  %485 = vmatmul.mubr.bf16.gmra.mrb[0].mxu0 %v450
  %v486 = vpop.f32.mrb[0].mxu0
  %v487 = vadd.f32 %v448, %v486
  %v488 = vpop.f32.mrb[0].mxu0
  %v489 = vpop.f32.mrb[0].mxu0
  %v490 = vadd.f32 %v448, %v489
  %v491 = vpop.f32.mrb[0].mxu0
  %492 = vdwg.mxu0
  %v493 = vmax.f32 %v487, 0.0
  %v494 = vmax.f32 %v490, 0.0
  %v495 = vpack.c.bf16 %v494, %v493
  %v496 = vpack.c.bf16 %v48, %v47
  %v497 = vpack.c.bf16 %v50, %v49
  %v498 = vlaneseq
  %v499 = vshrl.u32 %v498, 7
  %v500 = vsub.s32 0, %v499
  %v501 = vrot.slane %v51, %v500
  %v503 = vsel %vm205, %v495, 0
  %505 = vmatprep.subr.bf16.mxu0 0
  %506 = vmatpush1.bf16.msra.mxu0 %v496
  %507 = vmatprep.subr.bf16.mxu0 0
  %508 = vmatpush1.bf16.msra.mxu0 %v497
  %509 = vmatprep.subr.bf16.mxu0 0
  %510 = vmatpush1.bf16.msra.mxu0 0
  %511 = vmatprep.subr.bf16.mxu0 0
  %512 = vmatpush1.bf16.msra.mxu0 0
  %513 = vmatprep.subr.bf16.mxu0 0
  %514 = vmatpush1.bf16.msra.mxu0 0
  %515 = vmatprep.subr.bf16.mxu0 0
  %516 = vmatpush1.bf16.msra.mxu0 0
  %517 = vmatprep.subr.bf16.mxu0 0
  %518 = vmatpush1.bf16.msra.mxu0 0
  %519 = vmatprep.subr.bf16.mxu0 0
  %520 = vmatpush1.bf16.msra.mxu0 0
  %521 = vmatprep.subr.bf16.mxu0 0
  %522 = vmatpush1.bf16.msra.mxu0 0
  %523 = vmatprep.subr.bf16.mxu0 0
  %524 = vmatpush1.bf16.msra.mxu0 0
  %525 = vmatprep.subr.bf16.mxu0 0
  %526 = vmatpush1.bf16.msra.mxu0 0
  %527 = vmatprep.subr.bf16.mxu0 0
  %528 = vmatpush1.bf16.msra.mxu0 0
  %529 = vmatprep.subr.bf16.mxu0 0
  %530 = vmatpush1.bf16.msra.mxu0 0
  %531 = vmatprep.subr.bf16.mxu0 0
  %532 = vmatpush1.bf16.msra.mxu0 0
  %533 = vmatprep.subr.bf16.mxu0 0
  %534 = vmatpush1.bf16.msra.mxu0 0
  %535 = vmatprep.subr.bf16.mxu0 0
  %536 = vmatpush1.bf16.msra.mxu0 0
  %537 = vmatprep.mubr.bf16.mxu0 0
  %538 = vmatmul.mubr.bf16.gmra.mrb[0].mxu0 %v503
  %v539 = vpop.f32.mrb[0].mxu0
  %v540 = vadd.f32 %v501, %v539
  %v541 = vpop.f32.mrb[0].mxu0
  %v542 = vpop.f32.mrb[0].mxu0
  %v543 = vadd.f32 %v501, %v542
  %v544 = vpop.f32.mrb[0].mxu0
  %545 = vdwg.mxu0
  %v546 = vmax.f32 %v540, 0.0
  %v547 = vmax.f32 %v543, 0.0
  %v548 = vpack.c.bf16 %v53, %v52
  %v549 = vpack.c.bf16 %v55, %v54
  %v550 = vpack.c.bf16 %v57, %v56
  %v551 = vpack.c.bf16 %v59, %v58
  %v553 = vsel %vm205, %v400, 0
  %555 = vmatprep.subr.bf16.mxu0 0
  %556 = vmatpush1.bf16.msra.mxu0 %v550
  %557 = vmatprep.subr.bf16.mxu0 0
  %558 = vmatpush1.bf16.msra.mxu0 %v551
  %559 = vmatprep.subr.bf16.mxu0 0
  %560 = vmatpush1.bf16.msra.mxu0 0
  %561 = vmatprep.subr.bf16.mxu0 0
  %562 = vmatpush1.bf16.msra.mxu0 0
  %563 = vmatprep.subr.bf16.mxu0 0
  %564 = vmatpush1.bf16.msra.mxu0 0
  %565 = vmatprep.subr.bf16.mxu0 0
  %566 = vmatpush1.bf16.msra.mxu0 0
  %567 = vmatprep.subr.bf16.mxu0 0
  %568 = vmatpush1.bf16.msra.mxu0 0
  %569 = vmatprep.subr.bf16.mxu0 0
  %570 = vmatpush1.bf16.msra.mxu0 0
  %571 = vmatprep.subr.bf16.mxu0 0
  %572 = vmatpush1.bf16.msra.mxu0 0
  %573 = vmatprep.subr.bf16.mxu0 0
  %574 = vmatpush1.bf16.msra.mxu0 0
  %575 = vmatprep.subr.bf16.mxu0 0
  %576 = vmatpush1.bf16.msra.mxu0 0
  %577 = vmatprep.subr.bf16.mxu0 0
  %578 = vmatpush1.bf16.msra.mxu0 0
  %579 = vmatprep.subr.bf16.mxu0 0
  %580 = vmatpush1.bf16.msra.mxu0 0
  %581 = vmatprep.subr.bf16.mxu0 0
  %582 = vmatpush1.bf16.msra.mxu0 0
  %583 = vmatprep.subr.bf16.mxu0 0
  %584 = vmatpush1.bf16.msra.mxu0 0
  %585 = vmatprep.subr.bf16.mxu0 0
  %586 = vmatpush1.bf16.msra.mxu0 0
  %587 = vmatprep.mubr.bf16.mxu0 0
  %588 = vmatmul.mubr.bf16.gmra.mrb[0].mxu0 %v553
  %v589 = vpop.f32.mrb[0].mxu0
  %v590 = vadd.f32 0.0, %v589
  %v591 = vpop.f32.mrb[0].mxu0
  %v592 = vpop.f32.mrb[0].mxu0
  %v593 = vadd.f32 0.0, %v592
  %v594 = vpop.f32.mrb[0].mxu0
  %595 = vdwg.mxu0
  %v597 = vsel %vm205, %v252, 0
  %599 = vmatprep.subr.bf16.mxu0 0
  %600 = vmatpush1.bf16.msra.mxu0 %v548
  %601 = vmatprep.subr.bf16.mxu0 0
  %602 = vmatpush1.bf16.msra.mxu0 %v549
  %603 = vmatprep.subr.bf16.mxu0 0
  %604 = vmatpush1.bf16.msra.mxu0 0
  %605 = vmatprep.subr.bf16.mxu0 0
  %606 = vmatpush1.bf16.msra.mxu0 0
  %607 = vmatprep.subr.bf16.mxu0 0
  %608 = vmatpush1.bf16.msra.mxu0 0
  %609 = vmatprep.subr.bf16.mxu0 0
  %610 = vmatpush1.bf16.msra.mxu0 0
  %611 = vmatprep.subr.bf16.mxu0 0
  %612 = vmatpush1.bf16.msra.mxu0 0
  %613 = vmatprep.subr.bf16.mxu0 0
  %614 = vmatpush1.bf16.msra.mxu0 0
  %615 = vmatprep.subr.bf16.mxu0 0
  %616 = vmatpush1.bf16.msra.mxu0 0
  %617 = vmatprep.subr.bf16.mxu0 0
  %618 = vmatpush1.bf16.msra.mxu0 0
  %619 = vmatprep.subr.bf16.mxu0 0
  %620 = vmatpush1.bf16.msra.mxu0 0
  %621 = vmatprep.subr.bf16.mxu0 0
  %622 = vmatpush1.bf16.msra.mxu0 0
  %623 = vmatprep.subr.bf16.mxu0 0
  %624 = vmatpush1.bf16.msra.mxu0 0
  %625 = vmatprep.subr.bf16.mxu0 0
  %626 = vmatpush1.bf16.msra.mxu0 0
  %627 = vmatprep.subr.bf16.mxu0 0
  %628 = vmatpush1.bf16.msra.mxu0 0
  %629 = vmatprep.subr.bf16.mxu0 0
  %630 = vmatpush1.bf16.msra.mxu0 0
  %631 = vmatprep.mubr.bf16.mxu0 0
  %632 = vmatmul.mubr.bf16.gmra.mrb[0].mxu0 %v597
  %v633 = vpop.f32.mrb[0].mxu0
  %v634 = vadd.f32 %v590, %v633
  %v635 = vpop.f32.mrb[0].mxu0
  %v636 = vpop.f32.mrb[0].mxu0
  %v637 = vadd.f32 %v593, %v636
  %v638 = vpop.f32.mrb[0].mxu0
  %639 = vdwg.mxu0
  %v640 = vpack.c.bf16 %v547, %v546
  %v641 = vpack.c.bf16 %v61, %v60
  %v642 = vpack.c.bf16 %v63, %v62
  %v644 = vsel %vm205, %v640, 0
  %646 = vmatprep.subr.bf16.mxu0 0
  %647 = vmatpush1.bf16.msra.mxu0 %v641
  %648 = vmatprep.subr.bf16.mxu0 0
  %649 = vmatpush1.bf16.msra.mxu0 %v642
  %650 = vmatprep.subr.bf16.mxu0 0
  %651 = vmatpush1.bf16.msra.mxu0 0
  %652 = vmatprep.subr.bf16.mxu0 0
  %653 = vmatpush1.bf16.msra.mxu0 0
  %654 = vmatprep.subr.bf16.mxu0 0
  %655 = vmatpush1.bf16.msra.mxu0 0
  %656 = vmatprep.subr.bf16.mxu0 0
  %657 = vmatpush1.bf16.msra.mxu0 0
  %658 = vmatprep.subr.bf16.mxu0 0
  %659 = vmatpush1.bf16.msra.mxu0 0
  %660 = vmatprep.subr.bf16.mxu0 0
  %661 = vmatpush1.bf16.msra.mxu0 0
  %662 = vmatprep.subr.bf16.mxu0 0
  %663 = vmatpush1.bf16.msra.mxu0 0
  %664 = vmatprep.subr.bf16.mxu0 0
  %665 = vmatpush1.bf16.msra.mxu0 0
  %666 = vmatprep.subr.bf16.mxu0 0
  %667 = vmatpush1.bf16.msra.mxu0 0
  %668 = vmatprep.subr.bf16.mxu0 0
  %669 = vmatpush1.bf16.msra.mxu0 0
  %670 = vmatprep.subr.bf16.mxu0 0
  %671 = vmatpush1.bf16.msra.mxu0 0
  %672 = vmatprep.subr.bf16.mxu0 0
  %673 = vmatpush1.bf16.msra.mxu0 0
  %674 = vmatprep.subr.bf16.mxu0 0
  %675 = vmatpush1.bf16.msra.mxu0 0
  %676 = vmatprep.subr.bf16.mxu0 0
  %677 = vmatpush1.bf16.msra.mxu0 0
  %678 = vmatprep.mubr.bf16.mxu0 0
  %679 = vmatmul.mubr.bf16.gmra.mrb[0].mxu0 %v644
  %v680 = vpop.f32.mrb[0].mxu0
  %v681 = vadd.f32 0.0, %v680
  %v682 = vpop.f32.mrb[0].mxu0
  %v683 = vpop.f32.mrb[0].mxu0
  %v684 = vadd.f32 0.0, %v683
  %v685 = vpop.f32.mrb[0].mxu0
  %686 = vdwg.mxu0
  %v687 = vadd.f32 %v634, %v681
  %v688 = vadd.f32 %v637, %v684
  %v689 = vpack.c.bf16 %v688, %v687
  %v690 = vlaneseq
  %v691 = vshrl.u32 %v690, 7
  %v692 = vsub.s32 0, %v691
  %v693 = vrot.slane %v64, %v692
  %v695 = vsel %vm94, %v20, 0
  %697 = vmatprep.subr.bf16.mxu0 0
  %698 = vmatpush1.bf16.msra.mxu0 %v689
  %699 = vmatprep.subr.bf16.mxu0 0
  %700 = vmatpush1.bf16.msra.mxu0 0
  %701 = vmatprep.subr.bf16.mxu0 0
  %702 = vmatpush1.bf16.msra.mxu0 0
  %703 = vmatprep.subr.bf16.mxu0 0
  %704 = vmatpush1.bf16.msra.mxu0 0
  %705 = vmatprep.subr.bf16.mxu0 0
  %706 = vmatpush1.bf16.msra.mxu0 0
  %707 = vmatprep.subr.bf16.mxu0 0
  %708 = vmatpush1.bf16.msra.mxu0 0
  %709 = vmatprep.subr.bf16.mxu0 0
  %710 = vmatpush1.bf16.msra.mxu0 0
  %711 = vmatprep.subr.bf16.mxu0 0
  %712 = vmatpush1.bf16.msra.mxu0 0
  %713 = vmatprep.subr.bf16.mxu0 0
  %714 = vmatpush1.bf16.msra.mxu0 0
  %715 = vmatprep.subr.bf16.mxu0 0
  %716 = vmatpush1.bf16.msra.mxu0 0
  %717 = vmatprep.subr.bf16.mxu0 0
  %718 = vmatpush1.bf16.msra.mxu0 0
  %719 = vmatprep.subr.bf16.mxu0 0
  %720 = vmatpush1.bf16.msra.mxu0 0
  %721 = vmatprep.subr.bf16.mxu0 0
  %722 = vmatpush1.bf16.msra.mxu0 0
  %723 = vmatprep.subr.bf16.mxu0 0
  %724 = vmatpush1.bf16.msra.mxu0 0
  %725 = vmatprep.subr.bf16.mxu0 0
  %726 = vmatpush1.bf16.msra.mxu0 0
  %727 = vmatprep.subr.bf16.mxu0 0
  %728 = vmatpush1.bf16.msra.mxu0 0
  %729 = vmatprep.mubr.bf16.mxu0 0
  %730 = vmatmul.mubr.bf16.gmra.mrb[0].mxu0 %v695
  %v731 = vpop.f32.mrb[0].mxu0
  %v732 = vadd.f32 %v693, %v731
  %v733 = vpop.f32.mrb[0].mxu0
  %v734 = vpop.f32.mrb[0].mxu0
  %v735 = vpop.f32.mrb[0].mxu0
  %736 = vdwg.mxu0
  %v737 = vmax.f32 %v732, 0.0
  %v738 = vpack.c.bf16 %v737, %v737
  %v739 = vpack.c.bf16 %v66, %v65
  %v740 = vpack.c.bf16 %v68, %v67
  %v741 = vpack.c.bf16 %v70, %v69
  %v742 = vpack.c.bf16 %v71, %v71
  %v743 = vlaneseq
  %v744 = vshrl.u32 %v743, 7
  %v745 = vsub.s32 0, %v744
  %v746 = vrot.slane %v72, %v745
  %vm747 = vcmask 408576
  %v749 = vsel %vm747, %v738, 0
  %vm751 = vcmask 1040384
  %v753 = vsel %vm751, %v742, 0
  %755 = vmatprep.subr.bf16.mxu0 0
  %756 = vmatpush1.bf16.msra.mxu0 %v739
  %757 = vmatprep.subr.bf16.mxu0 0
  %758 = vmatpush1.bf16.msra.mxu0 %v740
  %759 = vmatprep.subr.bf16.mxu0 0
  %760 = vmatpush1.bf16.msra.mxu0 %v741
  %761 = vmatprep.subr.bf16.mxu0 0
  %762 = vmatpush1.bf16.msra.mxu0 %v753
  %763 = vmatprep.subr.bf16.mxu0 0
  %764 = vmatpush1.bf16.msra.mxu0 0
  %765 = vmatprep.subr.bf16.mxu0 0
  %766 = vmatpush1.bf16.msra.mxu0 0
  %767 = vmatprep.subr.bf16.mxu0 0
  %768 = vmatpush1.bf16.msra.mxu0 0
  %769 = vmatprep.subr.bf16.mxu0 0
  %770 = vmatpush1.bf16.msra.mxu0 0
  %771 = vmatprep.subr.bf16.mxu0 0
  %772 = vmatpush1.bf16.msra.mxu0 0
  %773 = vmatprep.subr.bf16.mxu0 0
  %774 = vmatpush1.bf16.msra.mxu0 0
  %775 = vmatprep.subr.bf16.mxu0 0
  %776 = vmatpush1.bf16.msra.mxu0 0
  %777 = vmatprep.subr.bf16.mxu0 0
  %778 = vmatpush1.bf16.msra.mxu0 0
  %779 = vmatprep.subr.bf16.mxu0 0
  %780 = vmatpush1.bf16.msra.mxu0 0
  %781 = vmatprep.subr.bf16.mxu0 0
  %782 = vmatpush1.bf16.msra.mxu0 0
  %783 = vmatprep.subr.bf16.mxu0 0
  %784 = vmatpush1.bf16.msra.mxu0 0
  %785 = vmatprep.subr.bf16.mxu0 0
  %786 = vmatpush1.bf16.msra.mxu0 0
  %787 = vmatprep.mubr.bf16.mxu0 0
  %788 = vmatmul.mubr.bf16.gmra.mrb[0].mxu0 %v749
  %v789 = vpop.f32.mrb[0].mxu0
  %v790 = vadd.f32 %v746, %v789
  %v791 = vpop.f32.mrb[0].mxu0
  %v792 = vpop.f32.mrb[0].mxu0
  %v793 = vpop.f32.mrb[0].mxu0
  %794 = vdwg.mxu0
  %v795 = vmax.f32 %v790, 0.0
  %v796 = vpack.c.bf16 %v795, %v795
  %v797 = vpack.c.bf16 %v74, %v73
  %v798 = vpack.c.bf16 %v76, %v75
  %v799 = vpack.c.bf16 %v78, %v77
  %v800 = vpack.c.bf16 %v79, %v79
  %v801 = vlaneseq
  %v802 = vshrl.u32 %v801, 7
  %v803 = vsub.s32 0, %v802
  %v804 = vrot.slane %v80, %v803
  %v806 = vsel %vm747, %v796, 0
  %v809 = vsel %vm751, %v800, 0
  %811 = vmatprep.subr.bf16.mxu0 0
  %812 = vmatpush1.bf16.msra.mxu0 %v797
  %813 = vmatprep.subr.bf16.mxu0 0
  %814 = vmatpush1.bf16.msra.mxu0 %v798
  %815 = vmatprep.subr.bf16.mxu0 0
  %816 = vmatpush1.bf16.msra.mxu0 %v799
  %817 = vmatprep.subr.bf16.mxu0 0
  %818 = vmatpush1.bf16.msra.mxu0 %v809
  %819 = vmatprep.subr.bf16.mxu0 0
  %820 = vmatpush1.bf16.msra.mxu0 0
  %821 = vmatprep.subr.bf16.mxu0 0
  %822 = vmatpush1.bf16.msra.mxu0 0
  %823 = vmatprep.subr.bf16.mxu0 0
  %824 = vmatpush1.bf16.msra.mxu0 0
  %825 = vmatprep.subr.bf16.mxu0 0
  %826 = vmatpush1.bf16.msra.mxu0 0
  %827 = vmatprep.subr.bf16.mxu0 0
  %828 = vmatpush1.bf16.msra.mxu0 0
  %829 = vmatprep.subr.bf16.mxu0 0
  %830 = vmatpush1.bf16.msra.mxu0 0
  %831 = vmatprep.subr.bf16.mxu0 0
  %832 = vmatpush1.bf16.msra.mxu0 0
  %833 = vmatprep.subr.bf16.mxu0 0
  %834 = vmatpush1.bf16.msra.mxu0 0
  %835 = vmatprep.subr.bf16.mxu0 0
  %836 = vmatpush1.bf16.msra.mxu0 0
  %837 = vmatprep.subr.bf16.mxu0 0
  %838 = vmatpush1.bf16.msra.mxu0 0
  %839 = vmatprep.subr.bf16.mxu0 0
  %840 = vmatpush1.bf16.msra.mxu0 0
  %841 = vmatprep.subr.bf16.mxu0 0
  %842 = vmatpush1.bf16.msra.mxu0 0
  %843 = vmatprep.mubr.bf16.mxu0 0
  %844 = vmatmul.mubr.bf16.gmra.mrb[0].mxu0 %v806
  %v845 = vpop.f32.mrb[0].mxu0
  %v846 = vadd.f32 %v804, %v845
  %v847 = vpop.f32.mrb[0].mxu0
  %v848 = vpop.f32.mrb[0].mxu0
  %v849 = vpop.f32.mrb[0].mxu0
  %850 = vdwg.mxu0
  %v851 = vsub.f32 0.0, %v846
  %v852 = vmul.f32 %v851, 1.442695
  %v853 = vpow.pop %v852
  %v854 = vadd.f32 %v853, 1.0
  %v855 = vrcp.pop %v854
  %vm856 = vcmask 1024
  %857 = vst.msk [vmem:[%s4] sm:$0x3] %vm856, %v855
  // Predicated region
  $region18: #{tpu_custom_call.1} parent=0 // pred_check
    _
  $region19: #{tpu_custom_call.1} parent=0 // pred_check_branch
    %859 = sbr.rel (0) target = $region21
  $region20: #{tpu_custom_call.1} parent=0 // pred_region
    _
  $region21: #{tpu_custom_call.1} parent=0 // pred_fallthru
    _
  // Predicated region
  $region22: #{tpu_custom_call.1} parent=0 // pred_check
    _
  $region23: #{tpu_custom_call.1} parent=0 // pred_check_branch
    %861 = sbr.rel (0) target = $region25
  $region24: #{tpu_custom_call.1} parent=0 // pred_region
    _
  $region25: #{tpu_custom_call.1} parent=0 // pred_fallthru
    _

</llo_original>
